<compile_context>
chip_gen: v5e
topology: v5e:2x2
jax: 0.10.0
libtpu: 0.0.40
codegen_flags: <defaults>
</compile_context>

<pallas_src>
import jax
import jax.numpy as jnp
from jax.experimental import pallas as pl
from jax.experimental.pallas import tpu as pltpu

# 0.5 * |d / 0.15|^2 == (0.5 / 0.0225) * d^2
_DIST_COEF = 0.5 / (0.15 * 0.15)


def _ceil_to(x: int, m: int) -> int:
    return -(-x // m) * m


def _reward_kernel(dist_ref, angle_ref, o_ref):
    # dist_ref / angle_ref / o_ref are aligned VMEM tiles; pure VPU elementwise.
    d = dist_ref[...].astype(jnp.float32)
    a = angle_ref[...].astype(jnp.float32)
    r = 1.0 - 0.5 * jnp.abs(a) - _DIST_COEF * (d * d)
    o_ref[...] = r.astype(o_ref.dtype)


def reward_function_head_duckietown(x, *, max_block_rows=1024):
    """x: (B, C) with C >= 2. Returns (B, C-1) reward (matches the PyTorch module)."""
    B, C = x.shape
    dist = x[:, 0]       # (B,)
    angle = x[:, 1:]     # (B, C-1)

    if C == 2:
        # ---------------- lane-dense path (the DuckieTown case) ----------------
        LANES = 128
        a_flat = angle[:, 0]                               # (B,)
        rows = max(8, _ceil_to(-(-B // LANES), 8))         # sublane-aligned row count
        block_rows = min(max_block_rows, rows)             # <= 1024*128*4B = 512 KiB/tile
        rows = _ceil_to(rows, block_rows)                  # grid divides evenly
        pad = rows * LANES - B
        dist_p = jnp.pad(dist, (0, pad)).reshape(rows, LANES)
        angle_p = jnp.pad(a_flat, (0, pad)).reshape(rows, LANES)

        out = pl.pallas_call(
            _reward_kernel,
            out_shape=jax.ShapeDtypeStruct((rows, LANES), x.dtype),
            grid=(rows // block_rows,),
            in_specs=[pl.BlockSpec((block_rows, LANES), lambda i: (i, 0)),
                      pl.BlockSpec((block_rows, LANES), lambda i: (i, 0))],
            out_specs=pl.BlockSpec((block_rows, LANES), lambda i: (i, 0)),
            compiler_params=pltpu.CompilerParams(
                dimension_semantics=("parallel",)),
        )(dist_p, angle_p)
        return out.reshape(-1)[:B].reshape(B, 1)

    # ---------------- general path (C > 2): broadcast dist over C-1 lanes ------
    block_rows = min(_ceil_to(B, 8), 1024)
    rows = _ceil_to(B, block_rows)
    pad = rows - B
    dist_p = jnp.pad(dist.reshape(B, 1), ((0, pad), (0, 0)))    # (rows, 1)
    angle_p = jnp.pad(angle, ((0, pad), (0, 0)))                # (rows, C-1)

    out = pl.pallas_call(
        _reward_kernel,
        out_shape=jax.ShapeDtypeStruct((rows, C - 1), x.dtype),
        grid=(rows // block_rows,),
        in_specs=[pl.BlockSpec((block_rows, 1), lambda i: (i, 0)),
                  pl.BlockSpec((block_rows, C - 1), lambda i: (i, 0))],
        out_specs=pl.BlockSpec((block_rows, C - 1), lambda i: (i, 0)),
        compiler_params=pltpu.CompilerParams(
            dimension_semantics=("parallel",)),
    )(dist_p, angle_p)
    return out[:B]


def _reference(x):
    dist = x[:, :1]
    angle = x[:, 1:]
    return 1.0 - 0.5 * jnp.abs(angle) - 0.5 * jnp.abs(dist / 0.15) ** 2


if __name__ == "__main__":
    key = jax.random.PRNGKey(0)
    k0, k1, k2 = jax.random.split(key, 3)

    # 1) The real DuckieTown shape: (batch, 2) = (dist, angle).
    x_small = jax.random.uniform(k0, (8, 2), dtype=jnp.float32,
                                 minval=-0.3, maxval=0.3)
    out_small = reward_function_head_duckietown(x_small)
    jax.block_until_ready(out_small)
    ref_small = _reference(x_small)
    assert out_small.shape == ref_small.shape, (out_small.shape, ref_small.shape)
    assert jnp.allclose(out_small, ref_small, atol=1e-5, rtol=1e-5)

    # 2) Larger batch exercising padding + the 1-D parallel grid (lane-dense path).
    x_big = jax.random.uniform(k1, (300, 2), dtype=jnp.float32,
                               minval=-0.5, maxval=0.5)
    out_big = reward_function_head_duckietown(x_big)
    jax.block_until_ready(out_big)
    assert jnp.allclose(out_big, _reference(x_big), atol=1e-5, rtol=1e-5)

    # 3) General C > 2 path (dist broadcast over the remaining columns).
    x_wide = jax.random.uniform(k2, (8, 5), dtype=jnp.float32,
                                minval=-0.3, maxval=0.3)
    out_wide = reward_function_head_duckietown(x_wide)
    jax.block_until_ready(out_wide)
    assert out_wide.shape == (8, 4)
    assert jnp.allclose(out_wide, _reference(x_wide), atol=1e-5, rtol=1e-5)

    print("KERNEL_OK")
</pallas_src>

<mosaic_0001>
module attributes {stable_mosaic.version = 11 : i64} {
  func.func @_reward_kernel(%arg0: i32, %arg1: memref<8x128xf32, #tpu.memory_space<vmem>>, %arg2: memref<8x128xf32, #tpu.memory_space<vmem>>, %arg3: memref<8x128xf32, #tpu.memory_space<vmem>>) attributes {dimension_semantics = [#tpu.dimension_semantics<parallel>], iteration_bounds = array<i64: 1>, scalar_prefetch = 0 : i64, scratch_operands = 0 : i64, tpu.core_type = #tpu.core_type<tc>, window_params = [{transform_indices = @transform_0, window_bounds = array<i64: 8, 128>}, {transform_indices = @transform_1, window_bounds = array<i64: 8, 128>}, {transform_indices = @transform_2, window_bounds = array<i64: 8, 128>}]} {
    %c0 = arith.constant 0 : index
    %c0_0 = arith.constant 0 : index
    %0 = vector.load %arg1[%c0, %c0_0] : memref<8x128xf32, #tpu.memory_space<vmem>>, vector<8x128xf32>
    %c0_1 = arith.constant 0 : index
    %c0_2 = arith.constant 0 : index
    %1 = vector.load %arg2[%c0_1, %c0_2] : memref<8x128xf32, #tpu.memory_space<vmem>>, vector<8x128xf32>
    %2 = math.absf %1 : vector<8x128xf32>
    %cst = arith.constant 5.000000e-01 : f32
    %3 = vector.broadcast %cst : f32 to vector<8x128xf32>
    %4 = arith.mulf %3, %2 : vector<8x128xf32>
    %cst_3 = arith.constant 1.000000e+00 : f32
    %5 = vector.broadcast %cst_3 : f32 to vector<8x128xf32>
    %6 = arith.subf %5, %4 : vector<8x128xf32>
    %7 = arith.mulf %0, %0 : vector<8x128xf32>
    %cst_4 = arith.constant 22.2222214 : f32
    %8 = vector.broadcast %cst_4 : f32 to vector<8x128xf32>
    %9 = arith.mulf %8, %7 : vector<8x128xf32>
    %10 = arith.subf %6, %9 : vector<8x128xf32>
    %c0_5 = arith.constant 0 : index
    %c0_6 = arith.constant 0 : index
    %11 = vector.load %arg3[%c0_5, %c0_6] : memref<8x128xf32, #tpu.memory_space<vmem>>, vector<8x128xf32>
    tpu.vector_store %arg3[%c0_5, %c0_6], %10 {strides = array<i32>} : memref<8x128xf32, #tpu.memory_space<vmem>>, vector<8x128xf32>,
    return
  }
  func.func @transform_0(%arg0: i32) -> (i32, i32) {
    %c0_i32 = arith.constant 0 : i32
    %c0_i32_0 = arith.constant 0 : i32
    return %arg0, %c0_i32 : i32, i32
  }
  func.func @transform_1(%arg0: i32) -> (i32, i32) {
    %c0_i32 = arith.constant 0 : i32
    %c0_i32_0 = arith.constant 0 : i32
    return %arg0, %c0_i32 : i32, i32
  }
  func.func @transform_2(%arg0: i32) -> (i32, i32) {
    %c0_i32 = arith.constant 0 : i32
    %c0_i32_0 = arith.constant 0 : i32
    return %arg0, %c0_i32 : i32, i32
  }
}

</mosaic_0001>

<llo_original>
// kernel: tpu_custom_call.1
$region0: #{tpu_custom_call.1}
  #allocation0 [shape = 'u32[]', space=smem, size = 0x4, offset = 0x4, fixed_abs, tag = 'smem constant byte address 0x4 - core index']
  #allocation1 [shape = 'u32[72,128]{1,0:T(1,128)}', space=vmem, size = 0x9000, scoped, tag = 'internal scratch']
  %s0 = inlined_call_operand.hbm [shape: f32[8,128], index: 0, kind: input, shape index: {}]
  %s1 = inlined_call_operand.hbm [shape: f32[8,128], index: 1, kind: input, shape index: {}]
  %s2 = inlined_call_operand.hbm [shape: f32[8,128], index: 2, kind: output, shape index: {}]
  %s3 = sld [smem:[#allocation0]]
  $region26: #{tpu_custom_call.1} parent=0
    _
  %s5 = ssub.s32 1, %s3
  %s6 = scalar_select 0, %s5, %s3
  $region1: #{tpu_custom_call.1} parent=0
    #allocation2 [shape = 'u8[4096]{0}', space=vmem, size = 0x1000, scoped, tag = 'input window, operand 0, single buffered']
    #allocation3 [shape = 's32[1]{0}', space=sflag, size = 0x4, scoped, tag = 'scoped memory for tpu_custom_call.1']
    #allocation4 [shape = 's32[1]{0}', space=sflag, size = 0x4, scoped, tag = 'scoped memory for tpu_custom_call.1']
    #allocation5 [shape = 'u8[4096]{0}', space=vmem, size = 0x1000, scoped, tag = 'input window, operand 1, single buffered']
    #allocation6 [shape = 's32[1]{0}', space=sflag, size = 0x4, scoped, tag = 'scoped memory for tpu_custom_call.1']
    #allocation7 [shape = 'u8[4096]{0}', space=vmem, size = 0x1000, scoped, tag = 'output window, operand 0, single buffered']
    %7 = vsyncpa [#allocation3], 0
    %8 = vsyncpa [#allocation6], 0
    %9 = vsyncpa [#allocation4], 0
    // Predicated region
    $region2: #{tpu_custom_call.1} parent=1 // pred_check
      _
    $region3: #{tpu_custom_call.1} parent=1 // pred_check_branch
      %11 = sbr.rel (0) target = $region5
    $region4: #{tpu_custom_call.1} parent=1 // pred_region
      %13 = vsyncadd [#allocation3], 0
      %s15 = sshll.u32 %s0, 4
      %s16 = int_to_ptr.hbm [resolvable:$true] %s15
      %s17 = sshll.u32 [#allocation2], 4
      %s18 = int_to_ptr.vmem [resolvable:$true] %s17
      %20 = dma.hbm_to_vmem [thread:$0]  %s16, 128, %s18, [#allocation3]
    $region5: #{tpu_custom_call.1} parent=1 // pred_fallthru
      _
    // Predicated region
    $region6: #{tpu_custom_call.1} parent=1 // pred_check
      _
    $region7: #{tpu_custom_call.1} parent=1 // pred_check_branch
      %22 = sbr.rel (0) target = $region9
    $region8: #{tpu_custom_call.1} parent=1 // pred_region
      %24 = vsyncadd [#allocation6], 0
      %s26 = sshll.u32 %s1, 4
      %s27 = int_to_ptr.hbm [resolvable:$true] %s26
      %s28 = sshll.u32 [#allocation5], 4
      %s29 = int_to_ptr.vmem [resolvable:$true] %s28
      %31 = dma.hbm_to_vmem [thread:$0]  %s27, 128, %s29, [#allocation6]
    $region9: #{tpu_custom_call.1} parent=1 // pred_fallthru
      _
    // Predicated region
    $region10: #{tpu_custom_call.1} parent=1 // pred_check
      _
    $region11: #{tpu_custom_call.1} parent=1 // pred_check_branch
      %33 = sbr.rel (0) target = $region13
    $region12: #{tpu_custom_call.1} parent=1 // pred_region
      %35 = dma.done [#allocation3], 128
    $region13: #{tpu_custom_call.1} parent=1 // pred_fallthru
      _
    // Predicated region
    $region14: #{tpu_custom_call.1} parent=1 // pred_check
      _
    $region15: #{tpu_custom_call.1} parent=1 // pred_check_branch
      %37 = sbr.rel (0) target = $region17
    $region16: #{tpu_custom_call.1} parent=1 // pred_region
      %39 = dma.done [#allocation6], 128
    $region17: #{tpu_custom_call.1} parent=1 // pred_fallthru
      _
    %v40 = vld [vmem:[#allocation2] sm:$0xff]
    %v41 = vld [vmem:[#allocation5] sm:$0xff]
    %v42 = vand.u32 2147483647, %v41
    %v43 = vmul.f32 %v42, 0.5
    %v44 = vsub.f32 1.0, %v43
    %v45 = vmul.f32 %v40, %v40
    %v46 = vmul.f32 %v45, 22.222221
    %v47 = vsub.f32 %v44, %v46
    %48 = vst [vmem:[#allocation7] sm:$0xff] %v47
    // Predicated region
    $region18: #{tpu_custom_call.1} parent=1 // pred_check
      _
    $region19: #{tpu_custom_call.1} parent=1 // pred_check_branch
      %50 = sbr.rel (0) target = $region21
    $region20: #{tpu_custom_call.1} parent=1 // pred_region
      %52 = vsyncadd [#allocation4], 0
      %s54 = sshll.u32 [#allocation7], 4
      %s55 = int_to_ptr.vmem [resolvable:$true] %s54
      %s56 = sshll.u32 %s2, 4
      %s57 = int_to_ptr.hbm [resolvable:$true] %s56
      %59 = dma.vmem_to_hbm [thread:$0]  %s55, 128, %s57, [#allocation4]
    $region21: #{tpu_custom_call.1} parent=1 // pred_fallthru
      _
    // Predicated region
    $region22: #{tpu_custom_call.1} parent=1 // pred_check
      _
    $region23: #{tpu_custom_call.1} parent=1 // pred_check_branch
      %61 = sbr.rel (0) target = $region25
    $region24: #{tpu_custom_call.1} parent=1 // pred_region
      %63 = dma.done [#allocation4], 128
    $region25: #{tpu_custom_call.1} parent=1 // pred_fallthru
      _
    %64 = vsyncpa [#allocation3], 1
    %65 = vsyncpa [#allocation6], 1
    %66 = vsyncpa [#allocation4], 1

</llo_original>
